<compile_context>
chip_gen: v6e
topology: v6e:2x2x1
jax: 0.10.0
libtpu: 0.0.40
codegen_flags: <defaults>
</compile_context>

<pallas_src>
import functools

import jax
import jax.numpy as jnp
from jax.experimental import pallas as pl
from jax.experimental.pallas import tpu as pltpu


# ---------------------------------------------------------------------------
# Fused self-attention kernel (one (batch, query-tile) grid step per call)
# ---------------------------------------------------------------------------
def _attn_kernel(x_q_ref, x_kv_ref, wq_ref, wk_ref, wv_ref,
                 bq_ref, bk_ref, bv_ref, gamma_ref, o_ref, *, compute_dtype):
    xq_f32 = x_q_ref[0]                  # (C, TQ) f32 — query pixels + residual
    xkv_f32 = x_kv_ref[0]                # (C, S)  f32 — all pixels for K/V

    xq = xq_f32.astype(compute_dtype)
    xkv = xkv_f32.astype(compute_dtype)

    # 1x1 conv projections == channel matmuls on the MXU, f32 accumulation.
    q = jnp.dot(wq_ref[...], xq, preferred_element_type=jnp.float32) + bq_ref[...]   # (D, TQ)
    k = jnp.dot(wk_ref[...], xkv, preferred_element_type=jnp.float32) + bk_ref[...]  # (D, S)
    v = jnp.dot(wv_ref[...], xkv, preferred_element_type=jnp.float32) + bv_ref[...]  # (C, S)

    # Attention logits: A[i, j] = sum_d q[d, i] * k[d, j]  ->  (TQ, S)
    logits = jax.lax.dot_general(
        q.astype(compute_dtype), k.astype(compute_dtype),
        dimension_numbers=(((0,), (0,)), ((), ())),
        preferred_element_type=jnp.float32)

    # Numerically stable softmax over keys (lane axis), all in f32.
    m = jnp.max(logits, axis=-1, keepdims=True)
    e = jnp.exp(logits - m)
    denom = jnp.sum(e, axis=-1, keepdims=True)
    p = e * pl.reciprocal(denom, approx=True)                    # (TQ, S)

    # out[c, i] = sum_j v[c, j] * p[i, j]  ->  (C, TQ), lane-dense store.
    attn_out = jax.lax.dot_general(
        v.astype(compute_dtype), p.astype(compute_dtype),
        dimension_numbers=(((1,), (1,)), ((), ())),
        preferred_element_type=jnp.float32)

    o_ref[0] = gamma_ref[...] * attn_out + xq_f32


# ---------------------------------------------------------------------------
# Wrapper: BlockSpecs / grid, NCHW boundary handling
# ---------------------------------------------------------------------------
def _pick_tile_q(s, preferred=256):
    """Largest multiple of 128 <= preferred that divides S; else the full S."""
    if s <= preferred or s % 128 != 0:
        return s
    t = (min(preferred, s) // 128) * 128
    while t > 128 and s % t != 0:
        t -= 128
    return t if s % t == 0 else s


def self_attention_forward(x, params, *, tile_q=None, compute_dtype=jnp.bfloat16):
    """x: (B, C, H, W) float32. Returns (B, C, H, W) float32."""
    b, c, h, w = x.shape
    s = h * w
    d = params["wq"].shape[0]

    x3 = x.reshape(b, c, s).astype(jnp.float32)      # channels on sublanes, pixels on lanes

    if tile_q is None:
        tile_q = _pick_tile_q(s)
    elif s % tile_q != 0 or (tile_q != s and tile_q % 128 != 0):
        tile_q = s
    n_q = s // tile_q

    wq = params["wq"].astype(compute_dtype)           # (D, C)
    wk = params["wk"].astype(compute_dtype)           # (D, C)
    wv = params["wv"].astype(compute_dtype)           # (C, C)
    bq = params["bq"].reshape(d, 1).astype(jnp.float32)
    bk = params["bk"].reshape(d, 1).astype(jnp.float32)
    bv = params["bv"].reshape(c, 1).astype(jnp.float32)
    gamma = jnp.asarray(params["gamma"], jnp.float32).reshape(1, 1)

    def full2d(shape):
        return pl.BlockSpec(shape, lambda bi, qi: (0, 0))

    kernel = functools.partial(_attn_kernel, compute_dtype=compute_dtype)

    out = pl.pallas_call(
        kernel,
        grid=(b, n_q),
        in_specs=[
            # query / residual pixels for this tile
            pl.BlockSpec((1, c, tile_q), lambda bi, qi: (bi, 0, qi)),
            # full pixel row of this batch element for K/V (re-used across qi)
            pl.BlockSpec((1, c, s), lambda bi, qi: (bi, 0, 0)),
            full2d((d, c)), full2d((d, c)), full2d((c, c)),
            full2d((d, 1)), full2d((d, 1)), full2d((c, 1)),
            full2d((1, 1)),
        ],
        out_specs=pl.BlockSpec((1, c, tile_q), lambda bi, qi: (bi, 0, qi)),
        out_shape=jax.ShapeDtypeStruct((b, c, s), jnp.float32),
        compiler_params=pltpu.CompilerParams(
            dimension_semantics=("parallel", "parallel"),
            vmem_limit_bytes=32 * 1024 * 1024,
        ),
    )(x3, x3, wq, wk, wv, bq, bk, bv, gamma)

    return out.reshape(b, c, h, w)


# ---------------------------------------------------------------------------
# Parameters (PyTorch Conv2d-style init) and pure-JAX f32 reference
# ---------------------------------------------------------------------------
def init_params(key, in_channels):
    d = in_channels // 8
    ks = jax.random.split(key, 6)
    bound = 1.0 / jnp.sqrt(jnp.float32(in_channels))   # fan_in of a 1x1 conv

    def u(k, shape):
        return jax.random.uniform(k, shape, jnp.float32, -bound, bound)

    return {
        "wq": u(ks[0], (d, in_channels)), "bq": u(ks[1], (d,)),
        "wk": u(ks[2], (d, in_channels)), "bk": u(ks[3], (d,)),
        "wv": u(ks[4], (in_channels, in_channels)), "bv": u(ks[5], (in_channels,)),
        # nn.Parameter(torch.zeros(1)) in the module; set nonzero in the test
        # so the attention path is actually exercised.
        "gamma": jnp.float32(0.0),
    }


def _ref_forward(x, params):
    b, c, h, w = x.shape
    s = h * w
    xf = x.reshape(b, c, s)
    q = jnp.einsum("dc,bcs->bds", params["wq"], xf) + params["bq"][None, :, None]
    k = jnp.einsum("dc,bcs->bds", params["wk"], xf) + params["bk"][None, :, None]
    v = jnp.einsum("oc,bcs->bos", params["wv"], xf) + params["bv"][None, :, None]
    attn = jnp.einsum("bdi,bdj->bij", q, k)            # (B, S, S)
    attn = jax.nn.softmax(attn, axis=-1)
    out = jnp.einsum("bcj,bij->bci", v, attn)          # (B, C, S)
    out = params["gamma"] * out + xf
    return out.reshape(b, c, h, w)


if __name__ == "__main__":
    key = jax.random.PRNGKey(0)
    pkey, xkey = jax.random.split(key)

    C, H, W, B = 32, 16, 16, 2                         # S = 256, D = C//8 = 4
    params = init_params(pkey, C)
    params["gamma"] = jnp.float32(0.5)                 # nonzero so attention matters

    x = jax.random.normal(xkey, (B, C, H, W), jnp.float32)

    out = jax.block_until_ready(
        self_attention_forward(x, params, tile_q=128))  # grid = (2 batches, 2 q-tiles)
    ref = jax.block_until_ready(_ref_forward(x, params))

    assert out.shape == (B, C, H, W), out.shape
    max_err = float(jnp.max(jnp.abs(out - ref)))
    assert jnp.allclose(out, ref, atol=1e-2, rtol=1e-2), max_err
    print("KERNEL_OK")
</pallas_src>

<mosaic_0001>
module attributes {stable_mosaic.version = 11 : i64} {
  func.func @_attn_kernel(%arg0: i32, %arg1: i32, %arg2: memref<1x32x128xf32, #tpu.memory_space<vmem>>, %arg3: memref<1x32x256xf32, #tpu.memory_space<vmem>>, %arg4: memref<4x32xbf16, #tpu.memory_space<vmem>>, %arg5: memref<4x32xbf16, #tpu.memory_space<vmem>>, %arg6: memref<32x32xbf16, #tpu.memory_space<vmem>>, %arg7: memref<4x1xf32, #tpu.memory_space<vmem>>, %arg8: memref<4x1xf32, #tpu.memory_space<vmem>>, %arg9: memref<32x1xf32, #tpu.memory_space<vmem>>, %arg10: memref<1x1xf32, #tpu.memory_space<vmem>>, %arg11: memref<1x32x128xf32, #tpu.memory_space<vmem>>) attributes {dimension_semantics = [#tpu.dimension_semantics<parallel>, #tpu.dimension_semantics<parallel>], iteration_bounds = array<i64: 2, 2>, scalar_prefetch = 0 : i64, scratch_operands = 0 : i64, tpu.core_type = #tpu.core_type<tc>, window_params = [{transform_indices = @transform_0, window_bounds = array<i64: 1, 32, 128>}, {transform_indices = @transform_1, window_bounds = array<i64: 1, 32, 256>}, {pipeline_mode = #tpu.pipeline_mode<synchronous>, transform_indices = @transform_2, window_bounds = array<i64: 4, 32>}, {pipeline_mode = #tpu.pipeline_mode<synchronous>, transform_indices = @transform_3, window_bounds = array<i64: 4, 32>}, {pipeline_mode = #tpu.pipeline_mode<synchronous>, transform_indices = @transform_4, window_bounds = array<i64: 32, 32>}, {pipeline_mode = #tpu.pipeline_mode<synchronous>, transform_indices = @transform_5, window_bounds = array<i64: 4, 1>}, {pipeline_mode = #tpu.pipeline_mode<synchronous>, transform_indices = @transform_6, window_bounds = array<i64: 4, 1>}, {pipeline_mode = #tpu.pipeline_mode<synchronous>, transform_indices = @transform_7, window_bounds = array<i64: 32, 1>}, {pipeline_mode = #tpu.pipeline_mode<synchronous>, transform_indices = @transform_8, window_bounds = array<i64: 1, 1>}, {transform_indices = @transform_9, window_bounds = array<i64: 1, 32, 128>}]} {
    %c0 = arith.constant 0 : index
    %c0_0 = arith.constant 0 : index
    %c0_1 = arith.constant 0 : index
    %0 = vector.load %arg2[%c0, %c0_0, %c0_1] : memref<1x32x128xf32, #tpu.memory_space<vmem>>, vector<1x32x128xf32>
    %1 = vector.shape_cast %0 : vector<1x32x128xf32> to vector<32x128xf32>
    %c0_2 = arith.constant 0 : index
    %c0_3 = arith.constant 0 : index
    %c0_4 = arith.constant 0 : index
    %2 = vector.load %arg3[%c0_2, %c0_3, %c0_4] : memref<1x32x256xf32, #tpu.memory_space<vmem>>, vector<1x32x256xf32>
    %3 = vector.shape_cast %2 : vector<1x32x256xf32> to vector<32x256xf32>
    %4 = arith.truncf %1 : vector<32x128xf32> to vector<32x128xbf16>
    %5 = arith.truncf %3 : vector<32x256xf32> to vector<32x256xbf16>
    %c0_5 = arith.constant 0 : index
    %c0_6 = arith.constant 0 : index
    %6 = vector.load %arg4[%c0_5, %c0_6] : memref<4x32xbf16, #tpu.memory_space<vmem>>, vector<4x32xbf16>
    %cst = arith.constant dense<0.000000e+00> : vector<4x128xf32>
    %7 = tpu.matmul %6, %4, %cst {dimension_numbers = #tpu.dot_dimension_numbers<[1], [0], [0], [1], [0, 0, 1, 1], [], []>} : vector<4x32xbf16>, vector<32x128xbf16>, vector<4x128xf32> -> vector<4x128xf32>
    %c0_7 = arith.constant 0 : index
    %c0_8 = arith.constant 0 : index
    %8 = vector.load %arg7[%c0_7, %c0_8] : memref<4x1xf32, #tpu.memory_space<vmem>>, vector<4x1xf32>
    %9 = vector.broadcast %8 : vector<4x1xf32> to vector<4x128xf32>
    %10 = arith.addf %7, %9 : vector<4x128xf32>
    %c0_9 = arith.constant 0 : index
    %c0_10 = arith.constant 0 : index
    %11 = vector.load %arg5[%c0_9, %c0_10] : memref<4x32xbf16, #tpu.memory_space<vmem>>, vector<4x32xbf16>
    %cst_11 = arith.constant dense<0.000000e+00> : vector<4x256xf32>
    %12 = tpu.matmul %11, %5, %cst_11 {dimension_numbers = #tpu.dot_dimension_numbers<[1], [0], [0], [1], [0, 0, 1, 1], [], []>} : vector<4x32xbf16>, vector<32x256xbf16>, vector<4x256xf32> -> vector<4x256xf32>
    %c0_12 = arith.constant 0 : index
    %c0_13 = arith.constant 0 : index
    %13 = vector.load %arg8[%c0_12, %c0_13] : memref<4x1xf32, #tpu.memory_space<vmem>>, vector<4x1xf32>
    %14 = vector.broadcast %13 : vector<4x1xf32> to vector<4x256xf32>
    %15 = arith.addf %12, %14 : vector<4x256xf32>
    %c0_14 = arith.constant 0 : index
    %c0_15 = arith.constant 0 : index
    %16 = vector.load %arg6[%c0_14, %c0_15] : memref<32x32xbf16, #tpu.memory_space<vmem>>, vector<32x32xbf16>
    %cst_16 = arith.constant dense<0.000000e+00> : vector<32x256xf32>
    %17 = tpu.matmul %16, %5, %cst_16 {dimension_numbers = #tpu.dot_dimension_numbers<[1], [0], [0], [1], [0, 0, 1, 1], [], []>} : vector<32x32xbf16>, vector<32x256xbf16>, vector<32x256xf32> -> vector<32x256xf32>
    %c0_17 = arith.constant 0 : index
    %c0_18 = arith.constant 0 : index
    %18 = vector.load %arg9[%c0_17, %c0_18] : memref<32x1xf32, #tpu.memory_space<vmem>>, vector<32x1xf32>
    %19 = vector.broadcast %18 : vector<32x1xf32> to vector<32x256xf32>
    %20 = arith.addf %17, %19 : vector<32x256xf32>
    %21 = arith.truncf %10 : vector<4x128xf32> to vector<4x128xbf16>
    %22 = arith.truncf %15 : vector<4x256xf32> to vector<4x256xbf16>
    %cst_19 = arith.constant dense<0.000000e+00> : vector<128x256xf32>
    %23 = tpu.matmul %21, %22, %cst_19 {dimension_numbers = #tpu.dot_dimension_numbers<[0], [0], [1], [1], [0, 1, 1, 1], [], []>} : vector<4x128xbf16>, vector<4x256xbf16>, vector<128x256xf32> -> vector<128x256xf32>
    %cst_20 = arith.constant dense<0xFF800000> : vector<128xf32>
    %24 = vector.multi_reduction <maximumf>, %23, %cst_20 [1] : vector<128x256xf32> to vector<128xf32>
    %25 = vector.shape_cast %24 : vector<128xf32> to vector<128x1xf32>
    %26 = vector.broadcast %25 : vector<128x1xf32> to vector<128x256xf32>
    %27 = arith.subf %23, %26 : vector<128x256xf32>
    %28 = math.exp %27 : vector<128x256xf32>
    %cst_21 = arith.constant dense<0.000000e+00> : vector<128xf32>
    %29 = vector.multi_reduction <add>, %28, %cst_21 [1] : vector<128x256xf32> to vector<128xf32>
    %30 = vector.shape_cast %29 : vector<128xf32> to vector<128x1xf32>
    %31 = tpu.reciprocal %30 {approx = true} : vector<128x1xf32> -> vector<128x1xf32>
    %32 = vector.broadcast %31 : vector<128x1xf32> to vector<128x256xf32>
    %33 = arith.mulf %28, %32 : vector<128x256xf32>
    %34 = arith.truncf %20 : vector<32x256xf32> to vector<32x256xbf16>
    %35 = arith.truncf %33 : vector<128x256xf32> to vector<128x256xbf16>
    %cst_22 = arith.constant dense<0.000000e+00> : vector<32x128xf32>
    %36 = tpu.matmul %34, %35, %cst_22 {dimension_numbers = #tpu.dot_dimension_numbers<[1], [1], [0], [0], [0, 0, 1, 0], [], []>} : vector<32x256xbf16>, vector<128x256xbf16>, vector<32x128xf32> -> vector<32x128xf32>
    %c0_23 = arith.constant 0 : index
    %c0_24 = arith.constant 0 : index
    %37 = vector.load %arg10[%c0_23, %c0_24] : memref<1x1xf32, #tpu.memory_space<vmem>>, vector<1x1xf32>
    %38 = vector.broadcast %37 : vector<1x1xf32> to vector<32x128xf32>
    %39 = arith.mulf %38, %36 : vector<32x128xf32>
    %40 = arith.addf %39, %1 : vector<32x128xf32>
    %c0_25 = arith.constant 0 : index
    %c0_26 = arith.constant 0 : index
    %c0_27 = arith.constant 0 : index
    %41 = vector.load %arg11[%c0_25, %c0_26, %c0_27] : memref<1x32x128xf32, #tpu.memory_space<vmem>>, vector<1x32x128xf32>
    %42 = vector.shape_cast %41 : vector<1x32x128xf32> to vector<32x128xf32>
    %43 = vector.shape_cast %40 : vector<32x128xf32> to vector<1x32x128xf32>
    tpu.vector_store %arg11[%c0_25, %c0_26, %c0_27], %43 {strides = array<i32>} : memref<1x32x128xf32, #tpu.memory_space<vmem>>, vector<1x32x128xf32>,
    return
  }
  func.func @transform_0(%arg0: i32, %arg1: i32) -> (i32, i32, i32) {
    %c0_i32 = arith.constant 0 : i32
    %c0_i32_0 = arith.constant 0 : i32
    return %arg0, %c0_i32, %arg1 : i32, i32, i32
  }
  func.func @transform_1(%arg0: i32, %arg1: i32) -> (i32, i32, i32) {
    %c0_i32 = arith.constant 0 : i32
    %c0_i32_0 = arith.constant 0 : i32
    %c0_i32_1 = arith.constant 0 : i32
    return %arg0, %c0_i32, %c0_i32_0 : i32, i32, i32
  }
  func.func @transform_2(%arg0: i32, %arg1: i32) -> (i32, i32) {
    %c0_i32 = arith.constant 0 : i32
    %c0_i32_0 = arith.constant 0 : i32
    %c0_i32_1 = arith.constant 0 : i32
    return %c0_i32, %c0_i32_0 : i32, i32
  }
  func.func @transform_3(%arg0: i32, %arg1: i32) -> (i32, i32) {
    %c0_i32 = arith.constant 0 : i32
    %c0_i32_0 = arith.constant 0 : i32
    %c0_i32_1 = arith.constant 0 : i32
    return %c0_i32, %c0_i32_0 : i32, i32
  }
  func.func @transform_4(%arg0: i32, %arg1: i32) -> (i32, i32) {
    %c0_i32 = arith.constant 0 : i32
    %c0_i32_0 = arith.constant 0 : i32
    %c0_i32_1 = arith.constant 0 : i32
    return %c0_i32, %c0_i32_0 : i32, i32
  }
  func.func @transform_5(%arg0: i32, %arg1: i32) -> (i32, i32) {
    %c0_i32 = arith.constant 0 : i32
    %c0_i32_0 = arith.constant 0 : i32
    %c0_i32_1 = arith.constant 0 : i32
    return %c0_i32, %c0_i32_0 : i32, i32
  }
  func.func @transform_6(%arg0: i32, %arg1: i32) -> (i32, i32) {
    %c0_i32 = arith.constant 0 : i32
    %c0_i32_0 = arith.constant 0 : i32
    %c0_i32_1 = arith.constant 0 : i32
    return %c0_i32, %c0_i32_0 : i32, i32
  }
  func.func @transform_7(%arg0: i32, %arg1: i32) -> (i32, i32) {
    %c0_i32 = arith.constant 0 : i32
    %c0_i32_0 = arith.constant 0 : i32
    %c0_i32_1 = arith.constant 0 : i32
    return %c0_i32, %c0_i32_0 : i32, i32
  }
  func.func @transform_8(%arg0: i32, %arg1: i32) -> (i32, i32) {
    %c0_i32 = arith.constant 0 : i32
    %c0_i32_0 = arith.constant 0 : i32
    %c0_i32_1 = arith.constant 0 : i32
    return %c0_i32, %c0_i32_0 : i32, i32
  }
  func.func @transform_9(%arg0: i32, %arg1: i32) -> (i32, i32, i32) {
    %c0_i32 = arith.constant 0 : i32
    %c0_i32_0 = arith.constant 0 : i32
    return %arg0, %c0_i32, %arg1 : i32, i32, i32
  }
}

</mosaic_0001>

<llo_original>
// kernel: tpu_custom_call.1
$region0: #{tpu_custom_call.1}
  #allocation0 [shape = 'u32[]', space=smem, size = 0x4, offset = 0x4, fixed_abs, tag = 'smem constant byte address 0x4 - core index']
  #allocation1 [shape = 'u32[144,128]{1,0:T(1,128)}', space=vmem, size = 0x12000, scoped, tag = 'internal scratch']
  #allocation2 [shape = 'f32[1,1]{1,0:T(1,128)S(1)}', space=vmem, size = 0x200, scoped, tag = 'scoped memory for tpu_custom_call.1']
  %s0 = inlined_call_operand.hbm [shape: f32[2,32,256], index: 0, kind: input, shape index: {}]
  %s1 = inlined_call_operand.hbm [shape: f32[2,32,256], index: 1, kind: input, shape index: {}]
  %s2 = inlined_call_operand.vmem [shape: bf16[4,32], index: 2, kind: input, shape index: {}]
  %s3 = inlined_call_operand.vmem [shape: bf16[4,32], index: 3, kind: input, shape index: {}]
  %s4 = inlined_call_operand.vmem [shape: bf16[32,32], index: 4, kind: input, shape index: {}]
  %s5 = inlined_call_operand.vmem [shape: f32[4,1], index: 5, kind: input, shape index: {}]
  %s6 = inlined_call_operand.vmem [shape: f32[4,1], index: 6, kind: input, shape index: {}]
  %s7 = inlined_call_operand.vmem [shape: f32[32,1], index: 7, kind: input, shape index: {}]
  %s8 = inlined_call_operand.<no memory space> [shape: f32[1,1], index: 8, kind: input, shape index: {}]
  %s9 = inlined_call_operand.hbm [shape: f32[2,32,256], index: 9, kind: output, shape index: {}]
  %s10 = sld [smem:[#allocation0]]
  $region77: #{tpu_custom_call.1} parent=0
    _
  %s12 = ssub.s32 1, %s10
  %s13 = scalar_select 0, %s12, %s10
  %v14 = vstv %s8
  %15 = vst [vmem:[#allocation2] sm:$0x1] %v14
  $region1: #{tpu_custom_call.1} parent=0
    #allocation3 [shape = 'u8[32768]{0}', space=vmem, size = 0x8000, scoped, tag = 'input window, operand 0']
    #allocation4 [shape = 's32[2]{0}', space=sflag, size = 0x8, scoped, tag = 'scoped memory for tpu_custom_call.1']
    #allocation5 [shape = 's32[2]{0}', space=sflag, size = 0x8, scoped, tag = 'scoped memory for tpu_custom_call.1']
    #allocation6 [shape = 'u8[65536]{0}', space=vmem, size = 0x10000, scoped, tag = 'input window, operand 1']
    #allocation7 [shape = 's32[2]{0}', space=sflag, size = 0x8, scoped, tag = 'scoped memory for tpu_custom_call.1']
    #allocation8 [shape = 'u8[32768]{0}', space=vmem, size = 0x8000, scoped, tag = 'output window, operand 0']
    %16 = vsyncpa [#allocation4], 0
    %s17 = scalar_lea.sflag [#allocation4], 1
    %18 = vsyncpa %s17, 0
    %19 = vsyncpa [#allocation7], 0
    %s20 = scalar_lea.sflag [#allocation7], 1
    %21 = vsyncpa %s20, 0
    %22 = vsyncpa [#allocation5], 0
    %s23 = scalar_lea.sflag [#allocation5], 1
    %24 = vsyncpa %s23, 0
    loop: start=0, step=1, limit=6
    $region2: #{tpu_custom_call.1} parent=1 // loop_pre_header
      _
    $region3: #{tpu_custom_call.1} parent=1 // loop_header
      %s26 = sphi 0, %s30
      %p27 = scmp.ge.s32.totalorder %s26, 6
      %s33 = sphi 0, %s45
      %s34 = sphi 0, %s41
      %s35 = sphi 0, %s33
      %s36 = sphi 0, %s34
      %s37 = sphi 0, %s35
      %s38 = sphi 0, %s36
      %s50 = sphi 0, %s52
      %s53 = sphi 0, %s50
      %s54 = sphi 0, %s53
      %s70 = sphi 0, %s54
      %s76 = sphi 0, %s78
      %s79 = sphi 0, %s76
      %s80 = sphi 0, %s79
      %s96 = sphi 0, %s80
      %s100 = sphi 0, %s100
      %s102 = sphi 0, %s100
      %s103 = sphi 0, %s102
      %s117 = sphi 0, %s103
      %s121 = sphi 0, %s121
      %s123 = sphi 0, %s121
      %s124 = sphi 0, %s123
      %s138 = sphi 0, %s124
      %s142 = sphi 0, %s142
      %s144 = sphi 0, %s142
      %s145 = sphi 0, %s144
      %s159 = sphi 0, %s145
      %s163 = sphi 0, %s163
      %s165 = sphi 0, %s163
      %s166 = sphi 0, %s165
      %s180 = sphi 0, %s166
      %s184 = sphi 0, %s184
      %s186 = sphi 0, %s184
      %s187 = sphi 0, %s186
      %s201 = sphi 0, %s187
      %s205 = sphi 0, %s205
      %s207 = sphi 0, %s205
      %s208 = sphi 0, %s207
      %s222 = sphi 0, %s208
      %s226 = sphi 0, %s226
      %s228 = sphi 0, %s226
      %s229 = sphi 0, %s228
      %s243 = sphi 0, %s229
      %s251 = sphi 0, %s253
      %s254 = sphi 0, %s251
      %s255 = sphi 0, %s254
      %s271 = sphi 0, %s255
    $region4: #{tpu_custom_call.1} parent=1 // loop_header_branch
      %29 = sbr.rel (%p27) target = $region8
    $region5: #{tpu_custom_call.1} parent=1 // loop_body
      %s31 = ssub.s32 %s26, 1
      %s32 = ssub.s32 %s26, 2
      %s39 = sadd.s32 1, %s34
      %p40 = scmp.ge.s32.totalorder %s39, 2
      %s41 = scalar_select %p40, 0, %s39
      %s42 = sadd.s32 1, %s33
      %s43 = scalar_select %p40, %s42, %s33
      %p44 = scmp.ge.s32.totalorder %s43, 2
      %s45 = scalar_select %p44, 0, %s43
      %s46 = ssub.s32 %s33, %s45
      %s47 = ssub.s32 %s34, %s41
      %s48 = sor.u32 %s46, %s47
      %p49 = scmp.eq.s32.totalorder %s48, 0
      %s51 = sadd.s32 %s50, 1
      %s52 = scalar_select %p49, %s50, %s51
      %p55 = pneg %p49
      %p56 = scmp.eq.s32.totalorder %s26, 3
      %p57 = por %p55, %p56
      %p58 = scmp.ne.s32.totalorder %s50, %s53
      %p59 = scmp.eq.s32.totalorder %s26, 0
      %p60 = por %p58, %p59
      %p61 = scmp.ne.s32.totalorder %s50, %s53
      %p62 = scmp.eq.s32.totalorder %s31, 3
      %p63 = por %p61, %p62
      %p64 = scmp.ne.s32.totalorder %s53, %s54
      %p65 = scmp.eq.s32.totalorder %s31, 0
      %p66 = por %p64, %p65
      %p67 = scmp.ne.s32.totalorder %s53, %s54
      %p68 = scmp.eq.s32.totalorder %s32, 3
      %p69 = por %p67, %p68
      %p71 = scmp.ne.s32.totalorder %s54, %s70
      %p72 = scmp.eq.s32.totalorder %s32, 0
      %p73 = por %p71, %p72
      %s74 = ssub.s32 %s33, %s45
      %p75 = scmp.eq.s32.totalorder %s74, 0
      %s77 = sadd.s32 %s76, 1
      %s78 = scalar_select %p75, %s76, %s77
      %p81 = pneg %p75
      %p82 = scmp.eq.s32.totalorder %s26, 3
      %p83 = por %p81, %p82
      %p84 = scmp.ne.s32.totalorder %s76, %s79
      %p85 = scmp.eq.s32.totalorder %s26, 0
      %p86 = por %p84, %p85
      %p87 = scmp.ne.s32.totalorder %s76, %s79
      %p88 = scmp.eq.s32.totalorder %s31, 3
      %p89 = por %p87, %p88
      %p90 = scmp.ne.s32.totalorder %s79, %s80
      %p91 = scmp.eq.s32.totalorder %s31, 0
      %p92 = por %p90, %p91
      %p93 = scmp.ne.s32.totalorder %s79, %s80
      %p94 = scmp.eq.s32.totalorder %s32, 3
      %p95 = por %p93, %p94
      %p97 = scmp.ne.s32.totalorder %s80, %s96
      %p98 = scmp.eq.s32.totalorder %s32, 0
      %p99 = por %p97, %p98
      %s101 = sadd.s32 %s100, 1
      %p104 = scmp.eq.s32.totalorder %s26, 3
      %p105 = scmp.ne.s32.totalorder %s100, %s102
      %p106 = scmp.eq.s32.totalorder %s26, 0
      %p107 = por %p105, %p106
      %p108 = scmp.ne.s32.totalorder %s100, %s102
      %p109 = scmp.eq.s32.totalorder %s31, 3
      %p110 = por %p108, %p109
      %p111 = scmp.ne.s32.totalorder %s102, %s103
      %p112 = scmp.eq.s32.totalorder %s31, 0
      %p113 = por %p111, %p112
      %p114 = scmp.ne.s32.totalorder %s102, %s103
      %p115 = scmp.eq.s32.totalorder %s32, 3
      %p116 = por %p114, %p115
      %p118 = scmp.ne.s32.totalorder %s103, %s117
      %p119 = scmp.eq.s32.totalorder %s32, 0
      %p120 = por %p118, %p119
      %s122 = sadd.s32 %s121, 1
      %p125 = scmp.eq.s32.totalorder %s26, 3
      %p126 = scmp.ne.s32.totalorder %s121, %s123
      %p127 = scmp.eq.s32.totalorder %s26, 0
      %p128 = por %p126, %p127
      %p129 = scmp.ne.s32.totalorder %s121, %s123
      %p130 = scmp.eq.s32.totalorder %s31, 3
      %p131 = por %p129, %p130
      %p132 = scmp.ne.s32.totalorder %s123, %s124
      %p133 = scmp.eq.s32.totalorder %s31, 0
      %p134 = por %p132, %p133
      %p135 = scmp.ne.s32.totalorder %s123, %s124
      %p136 = scmp.eq.s32.totalorder %s32, 3
      %p137 = por %p135, %p136
      %p139 = scmp.ne.s32.totalorder %s124, %s138
      %p140 = scmp.eq.s32.totalorder %s32, 0
      %p141 = por %p139, %p140
      %s143 = sadd.s32 %s142, 1
      %p146 = scmp.eq.s32.totalorder %s26, 3
      %p147 = scmp.ne.s32.totalorder %s142, %s144
      %p148 = scmp.eq.s32.totalorder %s26, 0
      %p149 = por %p147, %p148
      %p150 = scmp.ne.s32.totalorder %s142, %s144
      %p151 = scmp.eq.s32.totalorder %s31, 3
      %p152 = por %p150, %p151
      %p153 = scmp.ne.s32.totalorder %s144, %s145
      %p154 = scmp.eq.s32.totalorder %s31, 0
      %p155 = por %p153, %p154
      %p156 = scmp.ne.s32.totalorder %s144, %s145
      %p157 = scmp.eq.s32.totalorder %s32, 3
      %p158 = por %p156, %p157
      %p160 = scmp.ne.s32.totalorder %s145, %s159
      %p161 = scmp.eq.s32.totalorder %s32, 0
      %p162 = por %p160, %p161
      %s164 = sadd.s32 %s163, 1
      %p167 = scmp.eq.s32.totalorder %s26, 3
      %p168 = scmp.ne.s32.totalorder %s163, %s165
      %p169 = scmp.eq.s32.totalorder %s26, 0
      %p170 = por %p168, %p169
      %p171 = scmp.ne.s32.totalorder %s163, %s165
      %p172 = scmp.eq.s32.totalorder %s31, 3
      %p173 = por %p171, %p172
      %p174 = scmp.ne.s32.totalorder %s165, %s166
      %p175 = scmp.eq.s32.totalorder %s31, 0
      %p176 = por %p174, %p175
      %p177 = scmp.ne.s32.totalorder %s165, %s166
      %p178 = scmp.eq.s32.totalorder %s32, 3
      %p179 = por %p177, %p178
      %p181 = scmp.ne.s32.totalorder %s166, %s180
      %p182 = scmp.eq.s32.totalorder %s32, 0
      %p183 = por %p181, %p182
      %s185 = sadd.s32 %s184, 1
      %p188 = scmp.eq.s32.totalorder %s26, 3
      %p189 = scmp.ne.s32.totalorder %s184, %s186
      %p190 = scmp.eq.s32.totalorder %s26, 0
      %p191 = por %p189, %p190
      %p192 = scmp.ne.s32.totalorder %s184, %s186
      %p193 = scmp.eq.s32.totalorder %s31, 3
      %p194 = por %p192, %p193
      %p195 = scmp.ne.s32.totalorder %s186, %s187
      %p196 = scmp.eq.s32.totalorder %s31, 0
      %p197 = por %p195, %p196
      %p198 = scmp.ne.s32.totalorder %s186, %s187
      %p199 = scmp.eq.s32.totalorder %s32, 3
      %p200 = por %p198, %p199
      %p202 = scmp.ne.s32.totalorder %s187, %s201
      %p203 = scmp.eq.s32.totalorder %s32, 0
      %p204 = por %p202, %p203
      %s206 = sadd.s32 %s205, 1
      %p209 = scmp.eq.s32.totalorder %s26, 3
      %p210 = scmp.ne.s32.totalorder %s205, %s207
      %p211 = scmp.eq.s32.totalorder %s26, 0
      %p212 = por %p210, %p211
      %p213 = scmp.ne.s32.totalorder %s205, %s207
      %p214 = scmp.eq.s32.totalorder %s31, 3
      %p215 = por %p213, %p214
      %p216 = scmp.ne.s32.totalorder %s207, %s208
      %p217 = scmp.eq.s32.totalorder %s31, 0
      %p218 = por %p216, %p217
      %p219 = scmp.ne.s32.totalorder %s207, %s208
      %p220 = scmp.eq.s32.totalorder %s32, 3
      %p221 = por %p219, %p220
      %p223 = scmp.ne.s32.totalorder %s208, %s222
      %p224 = scmp.eq.s32.totalorder %s32, 0
      %p225 = por %p223, %p224
      %s227 = sadd.s32 %s226, 1
      %p230 = scmp.eq.s32.totalorder %s26, 3
      %p231 = scmp.ne.s32.totalorder %s226, %s228
      %p232 = scmp.eq.s32.totalorder %s26, 0
      %p233 = por %p231, %p232
      %p234 = scmp.ne.s32.totalorder %s226, %s228
      %p235 = scmp.eq.s32.totalorder %s31, 3
      %p236 = por %p234, %p235
      %p237 = scmp.ne.s32.totalorder %s228, %s229
      %p238 = scmp.eq.s32.totalorder %s31, 0
      %p239 = por %p237, %p238
      %p240 = scmp.ne.s32.totalorder %s228, %s229
      %p241 = scmp.eq.s32.totalorder %s32, 3
      %p242 = por %p240, %p241
      %p244 = scmp.ne.s32.totalorder %s229, %s243
      %p245 = scmp.eq.s32.totalorder %s32, 0
      %p246 = por %p244, %p245
      %s247 = ssub.s32 %s33, %s45
      %s248 = ssub.s32 %s34, %s41
      %s249 = sor.u32 %s247, %s248
      %p250 = scmp.eq.s32.totalorder %s249, 0
      %s252 = sadd.s32 %s251, 1
      %s253 = scalar_select %p250, %s251, %s252
      %p256 = pneg %p250
      %p257 = scmp.eq.s32.totalorder %s26, 3
      %p258 = por %p256, %p257
      %p259 = scmp.ne.s32.totalorder %s251, %s254
      %p260 = scmp.eq.s32.totalorder %s26, 0
      %p261 = por %p259, %p260
      %p262 = scmp.ne.s32.totalorder %s251, %s254
      %p263 = scmp.eq.s32.totalorder %s31, 3
      %p264 = por %p262, %p263
      %p265 = scmp.ne.s32.totalorder %s254, %s255
      %p266 = scmp.eq.s32.totalorder %s31, 0
      %p267 = por %p265, %p266
      %p268 = scmp.ne.s32.totalorder %s254, %s255
      %p269 = scmp.eq.s32.totalorder %s32, 3
      %p270 = por %p268, %p269
      %p272 = scmp.ne.s32.totalorder %s255, %s271
      %p273 = scmp.eq.s32.totalorder %s32, 0
      %p274 = por %p272, %p273
      %p275 = scmp.le.s32.totalorder 1, %s26
      %p276 = scmp.lt.s32.totalorder %s26, 5
      %p277 = pnand %p275, %p276
      %p278 = pneg %p277
      // Predicated region
      $region9: #{tpu_custom_call.1} parent=5 // pred_check
        _
      $region10: #{tpu_custom_call.1} parent=5 // pred_check_branch
        %280 = sbr.rel (%p277) target = $region12
      $region11: #{tpu_custom_call.1} parent=5 // pred_region
        %s281 = ssub.s32 %s26, 1
        // Predicated region
        $region13: #{tpu_custom_call.1} parent=11 // pred_check
          %p282 = pneg %p113
        $region14: #{tpu_custom_call.1} parent=11 // pred_check_branch
          %284 = sbr.rel (%p282) target = $region16
        $region15: #{tpu_custom_call.1} parent=11 // pred_region
          _
        $region16: #{tpu_custom_call.1} parent=11 // pred_fallthru
          _
        // Predicated region
        $region17: #{tpu_custom_call.1} parent=11 // pred_check
          %p285 = pneg %p134
        $region18: #{tpu_custom_call.1} parent=11 // pred_check_branch
          %287 = sbr.rel (%p285) target = $region20
        $region19: #{tpu_custom_call.1} parent=11 // pred_region
          _
        $region20: #{tpu_custom_call.1} parent=11 // pred_fallthru
          _
        // Predicated region
        $region21: #{tpu_custom_call.1} parent=11 // pred_check
          %p288 = pneg %p155
        $region22: #{tpu_custom_call.1} parent=11 // pred_check_branch
          %290 = sbr.rel (%p288) target = $region24
        $region23: #{tpu_custom_call.1} parent=11 // pred_region
          _
        $region24: #{tpu_custom_call.1} parent=11 // pred_fallthru
          _
        // Predicated region
        $region25: #{tpu_custom_call.1} parent=11 // pred_check
          %p291 = pneg %p176
        $region26: #{tpu_custom_call.1} parent=11 // pred_check_branch
          %293 = sbr.rel (%p291) target = $region28
        $region27: #{tpu_custom_call.1} parent=11 // pred_region
          _
        $region28: #{tpu_custom_call.1} parent=11 // pred_fallthru
          _
        // Predicated region
        $region29: #{tpu_custom_call.1} parent=11 // pred_check
          %p294 = pneg %p197
        $region30: #{tpu_custom_call.1} parent=11 // pred_check_branch
          %296 = sbr.rel (%p294) target = $region32
        $region31: #{tpu_custom_call.1} parent=11 // pred_region
          _
        $region32: #{tpu_custom_call.1} parent=11 // pred_fallthru
          _
        // Predicated region
        $region33: #{tpu_custom_call.1} parent=11 // pred_check
          %p297 = pneg %p218
        $region34: #{tpu_custom_call.1} parent=11 // pred_check_branch
          %299 = sbr.rel (%p297) target = $region36
        $region35: #{tpu_custom_call.1} parent=11 // pred_region
          _
        $region36: #{tpu_custom_call.1} parent=11 // pred_fallthru
          _
        // Predicated region
        $region37: #{tpu_custom_call.1} parent=11 // pred_check
          %p300 = pneg %p239
        $region38: #{tpu_custom_call.1} parent=11 // pred_check_branch
          %302 = sbr.rel (%p300) target = $region40
        $region39: #{tpu_custom_call.1} parent=11 // pred_region
          _
        $region40: #{tpu_custom_call.1} parent=11 // pred_fallthru
          _
      $region12: #{tpu_custom_call.1} parent=5 // pred_fallthru
        _
      %p303 = scmp.lt.s32.totalorder %s26, 4
      // Predicated region
      $region41: #{tpu_custom_call.1} parent=5 // pred_check
        %p304 = pneg %p303
      $region42: #{tpu_custom_call.1} parent=5 // pred_check_branch
        %306 = sbr.rel (%p304) target = $region44
      $region43: #{tpu_custom_call.1} parent=5 // pred_region
        // Predicated region
        $region45: #{tpu_custom_call.1} parent=43 // pred_check
          %p307 = pneg %p60
        $region46: #{tpu_custom_call.1} parent=43 // pred_check_branch
          %309 = sbr.rel (%p307) target = $region48
        $region47: #{tpu_custom_call.1} parent=43 // pred_region
          %s310 = sand.u32 %s50, 1
          %s311 = scalar_lea.sflag [#allocation4], %s310
          %s312 = sand.u32 %s50, 1
          %s313 = smul.addr %s312, 32
          %s314 = scalar_lea.vmem [#allocation3], %s313
          %s316 = ssub.s32 512, 512
          %317 = vsyncadd %s311, %s316
          %s318 = smul.addr %s33, 8
          %s319 = sadd.s32 %s34, %s318
          %s320 = smul.addr %s319, 128
          %s321 = scalar_lea.hbm %s0, %s320
          %s322 = sshll.u32 %s314, 4
          %s323 = int_to_ptr.vmem [resolvable:$true] %s322
          %328 = dma.hbm_to_vmem [thread:$0]  %s321, 512, %s323, %s311, 256, 128, 8
        $region48: #{tpu_custom_call.1} parent=43 // pred_fallthru
          _
        // Predicated region
        $region49: #{tpu_custom_call.1} parent=43 // pred_check
          %p329 = pneg %p86
        $region50: #{tpu_custom_call.1} parent=43 // pred_check_branch
          %331 = sbr.rel (%p329) target = $region52
        $region51: #{tpu_custom_call.1} parent=43 // pred_region
          %s332 = sand.u32 %s76, 1
          %s333 = scalar_lea.sflag [#allocation7], %s332
          %s334 = sand.u32 %s76, 1
          %s335 = smul.addr %s334, 64
          %s336 = scalar_lea.vmem [#allocation6], %s335
          %s338 = ssub.s32 1024, 1024
          %339 = vsyncadd %s333, %s338
          %s340 = smul.addr %s33, 8
          %s341 = smul.addr %s340, 128
          %s342 = scalar_lea.hbm %s1, %s341
          %s343 = sshll.u32 %s336, 4
          %s344 = int_to_ptr.vmem [resolvable:$true] %s343
          %349 = dma.hbm_to_vmem [thread:$0]  %s342, 1024, %s344, %s333, 256, 256, 16
        $region52: #{tpu_custom_call.1} parent=43 // pred_fallthru
          _
      $region44: #{tpu_custom_call.1} parent=5 // pred_fallthru
        _
      %p350 = scmp.le.s32.totalorder 1, %s26
      %p351 = scmp.lt.s32.totalorder %s26, 5
      %p352 = pnand %p350, %p351
      %p353 = pneg %p352
      // Predicated region
      $region53: #{tpu_custom_call.1} parent=5 // pred_check
        _
      $region54: #{tpu_custom_call.1} parent=5 // pred_check_branch
        %355 = sbr.rel (%p352) target = $region56
      $region55: #{tpu_custom_call.1} parent=5 // pred_region
        %s356 = ssub.s32 %s26, 1
        %s357 = sand.u32 %s53, 1
        %s358 = scalar_lea.sflag [#allocation4], %s357
        %s359 = sand.u32 %s53, 1
        %s360 = smul.addr %s359, 32
        %s361 = scalar_lea.vmem [#allocation3], %s360
        // Predicated region
        $region57: #{tpu_custom_call.1} parent=55 // pred_check
          %p362 = pneg %p66
        $region58: #{tpu_custom_call.1} parent=55 // pred_check_branch
          %364 = sbr.rel (%p362) target = $region60
        $region59: #{tpu_custom_call.1} parent=55 // pred_region
          %365 = dma.done %s358, 512
        $region60: #{tpu_custom_call.1} parent=55 // pred_fallthru
          _
        %s366 = sand.u32 %s79, 1
        %s367 = scalar_lea.sflag [#allocation7], %s366
        %s368 = sand.u32 %s79, 1
        %s369 = smul.addr %s368, 64
        %s370 = scalar_lea.vmem [#allocation6], %s369
        // Predicated region
        $region61: #{tpu_custom_call.1} parent=55 // pred_check
          %p371 = pneg %p92
        $region62: #{tpu_custom_call.1} parent=55 // pred_check_branch
          %373 = sbr.rel (%p371) target = $region64
        $region63: #{tpu_custom_call.1} parent=55 // pred_region
          %374 = dma.done %s367, 1024
        $region64: #{tpu_custom_call.1} parent=55 // pred_fallthru
          _
        %s375 = sand.u32 %s53, 1
        %s376 = scalar_lea.sflag [#allocation4], %s375
        %s377 = sand.u32 %s53, 1
        %s378 = smul.addr %s377, 32
        %s379 = scalar_lea.vmem [#allocation3], %s378
        %p380 = pneg %p66
        %p381 = pneg %p63
        %s382 = sand.u32 %s79, 1
        %s383 = scalar_lea.sflag [#allocation7], %s382
        %s384 = sand.u32 %s79, 1
        %s385 = smul.addr %s384, 64
        %s386 = scalar_lea.vmem [#allocation6], %s385
        %p387 = pneg %p92
        %p388 = pneg %p89
        %p389 = pneg %p113
        %p390 = pneg %p110
        %p391 = pneg %p134
        %p392 = pneg %p131
        %p393 = pneg %p155
        %p394 = pneg %p152
        %p395 = pneg %p176
        %p396 = pneg %p173
        %p397 = pneg %p197
        %p398 = pneg %p194
        %p399 = pneg %p218
        %p400 = pneg %p215
        %p401 = pneg %p239
        %p402 = pneg %p236
        %p403 = pneg %p267
        %p404 = pneg %p264
        %s405 = sand.u32 %s254, 1
        %s406 = scalar_lea.sflag [#allocation5], %s405
        %s407 = sand.u32 %s254, 1
        %s408 = smul.addr %s407, 32
        %s409 = scalar_lea.vmem [#allocation8], %s408
        %v411 = vld [vmem:[%s361] sm:$0xff]
        %v412 = vld [vmem:[%s361 + $0x8] sm:$0xff]
        %v413 = vld [vmem:[%s361 + $0x10] sm:$0xff]
        %v414 = vld [vmem:[%s361 + $0x18] sm:$0xff]
        %v415 = vld [vmem:[%s370] sm:$0xff]
        %v416 = vld [vmem:[%s370 + $0x8] sm:$0xff]
        %v417 = vld [vmem:[%s370 + $0x10] sm:$0xff]
        %v418 = vld [vmem:[%s370 + $0x18] sm:$0xff]
        %v419 = vld [vmem:[%s370 + $0x20] sm:$0xff]
        %v420 = vld [vmem:[%s370 + $0x28] sm:$0xff]
        %v421 = vld [vmem:[%s370 + $0x30] sm:$0xff]
        %v422 = vld [vmem:[%s370 + $0x38] sm:$0xff]
        %v423 = vpack.c.bf16 %v412, %v411
        %v424 = vpack.c.bf16 %v414, %v413
        %v425 = vpack.c.bf16 %v417, %v415
        %v426 = vpack.c.bf16 %v418, %v416
        %v427 = vpack.c.bf16 %v421, %v419
        %v428 = vpack.c.bf16 %v422, %v420
        %v429 = vld [vmem:[%s2] sm:$0x3]
        %v430 = vld [vmem:[%s5] sm:$0xf]
        %432 = vset.pattern.permute.xlu0 0
        %433 = vperm.xlu0 %432, %v430
        %v434 = vpop.permute.xlu0 %433
        %vm436 = vcmask 261120
        %v438 = vsel %vm436, %v429, 0
        %440 = vmatprep.subr.bf16.mxu0 0
        %441 = vmatpush1.bf16.msra.mxu0 0
        %442 = vmatprep.subr.bf16.mxu0 0
        %443 = vmatpush1.bf16.msra.mxu0 0
        %444 = vmatprep.subr.bf16.mxu0 0
        %445 = vmatpush1.bf16.msra.mxu0 0
        %446 = vmatprep.subr.bf16.mxu0 0
        %447 = vmatpush1.bf16.msra.mxu0 0
        %448 = vmatprep.subr.bf16.mxu0 0
        %449 = vmatpush1.bf16.msra.mxu0 0
        %450 = vmatprep.subr.bf16.mxu0 0
        %451 = vmatpush1.bf16.msra.mxu0 0
        %452 = vmatprep.subr.bf16.mxu0 0
        %453 = vmatpush1.bf16.msra.mxu0 %v424
        %454 = vmatprep.subr.bf16.mxu0 0
        %455 = vmatpush1.bf16.msra.mxu0 %v423
        %456 = vmatprep.subr.bf16.mxu0 0
        %457 = vmatpush2.bf16.msra.mxu0 0
        %458 = vmatprep.subr.bf16.mxu0 0
        %459 = vmatpush2.bf16.msra.mxu0 0
        %460 = vmatprep.subr.bf16.mxu0 0
        %461 = vmatpush2.bf16.msra.mxu0 0
        %462 = vmatprep.subr.bf16.mxu0 0
        %463 = vmatpush2.bf16.msra.mxu0 0
        %464 = vmatprep.subr.bf16.mxu0 0
        %465 = vmatpush2.bf16.msra.mxu0 0
        %466 = vmatprep.subr.bf16.mxu0 0
        %467 = vmatpush2.bf16.msra.mxu0 0
        %468 = vmatprep.subr.bf16.mxu0 0
        %469 = vmatpush2.bf16.msra.mxu0 0
        %470 = vmatprep.subr.bf16.mxu0 0
        %471 = vmatpush2.bf16.msra.mxu0 0
        %472 = vmatprep.mubr.bf16.mxu0 0
        %473 = vmatmul.mubr.bf16.gmra.mxu0 %v438
        %v474 = vpop.f32.mrf.mxu0
        %v475 = vadd.f32 %v434, %v474
        %v476 = vpop.f32.mrf.mxu0
        %v477 = vpop.f32.mrf.mxu0
        %v478 = vpop.f32.mrf.mxu0
        %479 = vdwg.mxu0
        %v480 = vld [vmem:[%s3] sm:$0x3]
        %v481 = vld [vmem:[%s6] sm:$0xf]
        %483 = vset.pattern.permute.xlu0 0
        %484 = vperm.xlu0 %483, %v481
        %v485 = vpop.permute.xlu0 %484
        %v488 = vsel %vm436, %v480, 0
        %490 = vmatprep.subr.bf16.mxu0 0
        %491 = vmatpush1.bf16.msra.mxu0 0
        %492 = vmatprep.subr.bf16.mxu0 0
        %493 = vmatpush1.bf16.msra.mxu0 0
        %494 = vmatprep.subr.bf16.mxu0 0
        %495 = vmatpush1.bf16.msra.mxu0 0
        %496 = vmatprep.subr.bf16.mxu0 0
        %497 = vmatpush1.bf16.msra.mxu0 0
        %498 = vmatprep.subr.bf16.mxu0 0
        %499 = vmatpush1.bf16.msra.mxu0 0
        %500 = vmatprep.subr.bf16.mxu0 0
        %501 = vmatpush1.bf16.msra.mxu0 0
        %502 = vmatprep.subr.bf16.mxu0 %v428
        %503 = vmatpush1.bf16.msra.mxu0 %v427
        %504 = vmatprep.subr.bf16.mxu0 %v426
        %505 = vmatpush1.bf16.msra.mxu0 %v425
        %506 = vmatprep.subr.bf16.mxu0 0
        %507 = vmatpush2.bf16.msra.mxu0 0
        %508 = vmatprep.subr.bf16.mxu0 0
        %509 = vmatpush2.bf16.msra.mxu0 0
        %510 = vmatprep.subr.bf16.mxu0 0
        %511 = vmatpush2.bf16.msra.mxu0 0
        %512 = vmatprep.subr.bf16.mxu0 0
        %513 = vmatpush2.bf16.msra.mxu0 0
        %514 = vmatprep.subr.bf16.mxu0 0
        %515 = vmatpush2.bf16.msra.mxu0 0
        %516 = vmatprep.subr.bf16.mxu0 0
        %517 = vmatpush2.bf16.msra.mxu0 0
        %518 = vmatprep.subr.bf16.mxu0 0
        %519 = vmatpush2.bf16.msra.mxu0 0
        %520 = vmatprep.subr.bf16.mxu0 0
        %521 = vmatpush2.bf16.msra.mxu0 0
        %522 = vmatprep.mubr.bf16.mxu0 0
        %523 = vmatmul.mubr.bf16.gmra.mxu0 %v488
        %v524 = vpop.f32.mrf.mxu0
        %v525 = vadd.f32 %v485, %v524
        %v526 = vpop.f32.mrf.mxu0
        %v527 = vadd.f32 %v485, %v526
        %v528 = vpop.f32.mrf.mxu0
        %v529 = vpop.f32.mrf.mxu0
        %530 = vdwg.mxu0
        %v531 = vld [vmem:[%s4] sm:$0xf]
        %v532 = vld [vmem:[%s4 + $0x4] sm:$0xf]
        %v533 = vld [vmem:[%s4 + $0x8] sm:$0xf]
        %v534 = vld [vmem:[%s4 + $0xc] sm:$0xf]
        %v535 = vld [vmem:[%s7] sm:$0xff]
        %v536 = vld [vmem:[%s7 + $0x8] sm:$0xff]
        %v537 = vld [vmem:[%s7 + $0x10] sm:$0xff]
        %v538 = vld [vmem:[%s7 + $0x18] sm:$0xff]
        %540 = vset.pattern.permute.xlu0 0
        %541 = vperm.xlu0 %540, %v535
        %v542 = vpop.permute.xlu0 %541
        %545 = vset.pattern.permute.xlu0 0
        %546 = vperm.xlu0 %545, %v536
        %v547 = vpop.permute.xlu0 %546
        %550 = vset.pattern.permute.xlu0 0
        %551 = vperm.xlu0 %550, %v537
        %v552 = vpop.permute.xlu0 %551
        %555 = vset.pattern.permute.xlu0 0
        %556 = vperm.xlu0 %555, %v538
        %v557 = vpop.permute.xlu0 %556
        %v563 = vunpack.c.l.b16 %v531
        %v564 = vunpack.c.l.b16 %v532
        %v565 = vunpack.c.l.b16 %v533
        %v566 = vunpack.c.l.b16 %v534
        %v567 = vpack.c.b16 %v564, %v563
        %v568 = vpack.c.b16 %v566, %v565
        %v570 = vsel %vm436, %v567, 0
        %v573 = vsel %vm436, %v568, 0
        %575 = vmatprep.subr.bf16.mxu0 0
        %576 = vmatpush1.bf16.msra.mxu0 0
        %577 = vmatprep.subr.bf16.mxu0 0
        %578 = vmatpush1.bf16.msra.mxu0 0
        %579 = vmatprep.subr.bf16.mxu0 0
        %580 = vmatpush1.bf16.msra.mxu0 0
        %581 = vmatprep.subr.bf16.mxu0 0
        %582 = vmatpush1.bf16.msra.mxu0 0
        %583 = vmatprep.subr.bf16.mxu0 0
        %584 = vmatpush1.bf16.msra.mxu0 0
        %585 = vmatprep.subr.bf16.mxu0 0
        %586 = vmatpush1.bf16.msra.mxu0 0
        %587 = vmatprep.subr.bf16.mxu0 %v428
        %588 = vmatpush1.bf16.msra.mxu0 %v427
        %589 = vmatprep.subr.bf16.mxu0 %v426
        %590 = vmatpush1.bf16.msra.mxu0 %v425
        %591 = vmatprep.subr.bf16.mxu0 0
        %592 = vmatpush2.bf16.msra.mxu0 0
        %593 = vmatprep.subr.bf16.mxu0 0
        %594 = vmatpush2.bf16.msra.mxu0 0
        %595 = vmatprep.subr.bf16.mxu0 0
        %596 = vmatpush2.bf16.msra.mxu0 0
        %597 = vmatprep.subr.bf16.mxu0 0
        %598 = vmatpush2.bf16.msra.mxu0 0
        %599 = vmatprep.subr.bf16.mxu0 0
        %600 = vmatpush2.bf16.msra.mxu0 0
        %601 = vmatprep.subr.bf16.mxu0 0
        %602 = vmatpush2.bf16.msra.mxu0 0
        %603 = vmatprep.subr.bf16.mxu0 0
        %604 = vmatpush2.bf16.msra.mxu0 0
        %605 = vmatprep.subr.bf16.mxu0 0
        %606 = vmatpush2.bf16.msra.mxu0 0
        %607 = vmatprep.mubr.bf16.mxu0 0
        %608 = vmatmul.mubr.bf16.gmra.mxu0 %v570
        %v609 = vpop.f32.mrf.mxu0
        %v610 = vadd.f32 %v542, %v609
        %v611 = vpop.f32.mrf.mxu0
        %v612 = vadd.f32 %v542, %v611
        %v613 = vpop.f32.mrf.mxu0
        %v614 = vadd.f32 %v547, %v613
        %v615 = vpop.f32.mrf.mxu0
        %v616 = vadd.f32 %v547, %v615
        %617 = vmatprep.mubr.bf16.mxu0 0
        %618 = vmatmul.mubr.bf16.gmra.mxu0 %v573
        %v619 = vpop.f32.mrf.mxu0
        %v620 = vadd.f32 %v552, %v619
        %v621 = vpop.f32.mrf.mxu0
        %v622 = vadd.f32 %v552, %v621
        %v623 = vpop.f32.mrf.mxu0
        %v624 = vadd.f32 %v557, %v623
        %v625 = vpop.f32.mrf.mxu0
        %v626 = vadd.f32 %v557, %v625
        %627 = vdwg.mxu0
        %v628 = vpack.c.bf16 %v475, %v475
        %v629 = vpack.c.bf16 %v525, %v525
        %v630 = vpack.c.bf16 %v527, %v527
        %631 = vxpose.xlu0.c.b16.start [1/8] %v628, 128
        %632 = vxpose.xlu0.c.b16.cont [2/8] 0, 128
        %633 = vxpose.xlu0.c.b16.cont [3/8] 0, 128
        %634 = vxpose.xlu0.c.b16.cont [4/8] 0, 128
        %635 = vxpose.xlu0.c.b16.cont [5/8] 0, 128
        %636 = vxpose.xlu0.c.b16.cont [6/8] 0, 128
        %637 = vxpose.xlu0.c.b16.cont [7/8] 0, 128
        %638 = vxpose.xlu0.c.b16.end [8/8] 0, 128
        %v639 = vpop.trf.xlu0
        %v640 = vpop.trf.xlu0
        %v641 = vpop.trf.xlu0
        %v642 = vpop.trf.xlu0
        %v643 = vpop.trf.xlu0
        %v644 = vpop.trf.xlu0
        %v645 = vpop.trf.xlu0
        %v646 = vpop.trf.xlu0
        %vm647 = vcmask 31744
        %v649 = vsel %vm647, %v639, 0
        %v652 = vsel %vm647, %v640, 0
        %v655 = vsel %vm647, %v641, 0
        %v658 = vsel %vm647, %v642, 0
        %v661 = vsel %vm647, %v643, 0
        %v664 = vsel %vm647, %v644, 0
        %v667 = vsel %vm647, %v645, 0
        %v670 = vsel %vm647, %v646, 0
        %vm672 = vcmask 1041408
        %v674 = vsel %vm672, %v629, 0
        %v677 = vsel %vm672, %v630, 0
        %679 = vmatprep.subr.bf16.mxu0 0
        %680 = vmatpush1.bf16.msra.mxu0 0
        %681 = vmatprep.subr.bf16.mxu0 0
        %682 = vmatpush1.bf16.msra.mxu0 0
        %683 = vmatprep.subr.bf16.mxu0 0
        %684 = vmatpush1.bf16.msra.mxu0 0
        %685 = vmatprep.subr.bf16.mxu0 0
        %686 = vmatpush1.bf16.msra.mxu0 0
        %687 = vmatprep.subr.bf16.mxu0 0
        %688 = vmatpush1.bf16.msra.mxu0 0
        %689 = vmatprep.subr.bf16.mxu0 0
        %690 = vmatpush1.bf16.msra.mxu0 0
        %691 = vmatprep.subr.bf16.mxu0 0
        %692 = vmatpush1.bf16.msra.mxu0 0
        %693 = vmatprep.subr.bf16.mxu0 %v677
        %694 = vmatpush1.bf16.msra.mxu0 %v674
        %695 = vmatprep.subr.bf16.mxu0 0
        %696 = vmatpush2.bf16.msra.mxu0 0
        %697 = vmatprep.subr.bf16.mxu0 0
        %698 = vmatpush2.bf16.msra.mxu0 0
        %699 = vmatprep.subr.bf16.mxu0 0
        %700 = vmatpush2.bf16.msra.mxu0 0
        %701 = vmatprep.subr.bf16.mxu0 0
        %702 = vmatpush2.bf16.msra.mxu0 0
        %703 = vmatprep.subr.bf16.mxu0 0
        %704 = vmatpush2.bf16.msra.mxu0 0
        %705 = vmatprep.subr.bf16.mxu0 0
        %706 = vmatpush2.bf16.msra.mxu0 0
        %707 = vmatprep.subr.bf16.mxu0 0
        %708 = vmatpush2.bf16.msra.mxu0 0
        %709 = vmatprep.subr.bf16.mxu0 0
        %710 = vmatpush2.bf16.msra.mxu0 0
        %711 = vmatprep.mubr.bf16.mxu0 0
        %712 = vmatmul.mubr.bf16.gmra.mxu0 %v649
        %v713 = vpop.f32.mrf.mxu0
        %v714 = vadd.f32 0.0, %v713
        %v715 = vpop.f32.mrf.mxu0
        %v716 = vadd.f32 0.0, %v715
        %v717 = vpop.f32.mrf.mxu0
        %v718 = vadd.f32 0.0, %v717
        %v719 = vpop.f32.mrf.mxu0
        %v720 = vadd.f32 0.0, %v719
        %721 = vmatprep.mubr.bf16.mxu0 0
        %722 = vmatmul.mubr.bf16.gmra.mxu0 %v652
        %v723 = vpop.f32.mrf.mxu0
        %v724 = vadd.f32 0.0, %v723
        %v725 = vpop.f32.mrf.mxu0
        %v726 = vadd.f32 0.0, %v725
        %v727 = vpop.f32.mrf.mxu0
        %v728 = vadd.f32 0.0, %v727
        %v729 = vpop.f32.mrf.mxu0
        %v730 = vadd.f32 0.0, %v729
        %731 = vmatprep.mubr.bf16.mxu0 0
        %732 = vmatmul.mubr.bf16.gmra.mxu0 %v655
        %v733 = vpop.f32.mrf.mxu0
        %v734 = vadd.f32 0.0, %v733
        %v735 = vpop.f32.mrf.mxu0
        %v736 = vadd.f32 0.0, %v735
        %v737 = vpop.f32.mrf.mxu0
        %v738 = vadd.f32 0.0, %v737
        %v739 = vpop.f32.mrf.mxu0
        %v740 = vadd.f32 0.0, %v739
        %741 = vmatprep.mubr.bf16.mxu0 0
        %742 = vmatmul.mubr.bf16.gmra.mxu0 %v658
        %v743 = vpop.f32.mrf.mxu0
        %v744 = vadd.f32 0.0, %v743
        %v745 = vpop.f32.mrf.mxu0
        %v746 = vadd.f32 0.0, %v745
        %v747 = vpop.f32.mrf.mxu0
        %v748 = vadd.f32 0.0, %v747
        %v749 = vpop.f32.mrf.mxu0
        %v750 = vadd.f32 0.0, %v749
        %751 = vmatprep.mubr.bf16.mxu0 0
        %752 = vmatmul.mubr.bf16.gmra.mxu0 %v661
        %v753 = vpop.f32.mrf.mxu0
        %v754 = vadd.f32 0.0, %v753
        %v755 = vpop.f32.mrf.mxu0
        %v756 = vadd.f32 0.0, %v755
        %v757 = vpop.f32.mrf.mxu0
        %v758 = vadd.f32 0.0, %v757
        %v759 = vpop.f32.mrf.mxu0
        %v760 = vadd.f32 0.0, %v759
        %761 = vmatprep.mubr.bf16.mxu0 0
        %762 = vmatmul.mubr.bf16.gmra.mxu0 %v664
        %v763 = vpop.f32.mrf.mxu0
        %v764 = vadd.f32 0.0, %v763
        %v765 = vpop.f32.mrf.mxu0
        %v766 = vadd.f32 0.0, %v765
        %v767 = vpop.f32.mrf.mxu0
        %v768 = vadd.f32 0.0, %v767
        %v769 = vpop.f32.mrf.mxu0
        %v770 = vadd.f32 0.0, %v769
        %771 = vmatprep.mubr.bf16.mxu0 0
        %772 = vmatmul.mubr.bf16.gmra.mxu0 %v667
        %v773 = vpop.f32.mrf.mxu0
        %v774 = vadd.f32 0.0, %v773
        %v775 = vpop.f32.mrf.mxu0
        %v776 = vadd.f32 0.0, %v775
        %v777 = vpop.f32.mrf.mxu0
        %v778 = vadd.f32 0.0, %v777
        %v779 = vpop.f32.mrf.mxu0
        %v780 = vadd.f32 0.0, %v779
        %781 = vmatprep.mubr.bf16.mxu0 0
        %782 = vmatmul.mubr.bf16.gmra.mxu0 %v670
        %v783 = vpop.f32.mrf.mxu0
        %v784 = vadd.f32 0.0, %v783
        %v785 = vpop.f32.mrf.mxu0
        %v786 = vadd.f32 0.0, %v785
        %v787 = vpop.f32.mrf.mxu0
        %v788 = vadd.f32 0.0, %v787
        %v789 = vpop.f32.mrf.mxu0
        %v790 = vadd.f32 0.0, %v789
        %791 = vdwg.mxu0
        %v792 = vmax.f32 %v714, %v716
        %793 = vmax.xlane.f32.xlu0 %v792
        %v794 = vpop.xlane.xlu0 %793
        %v795 = vmax.f32 %v718, %v720
        %796 = vmax.xlane.f32.xlu0 %v795
        %v797 = vpop.xlane.xlu0 %796
        %v798 = vmax.f32 %v724, %v726
        %799 = vmax.xlane.f32.xlu0 %v798
        %v800 = vpop.xlane.xlu0 %799
        %v801 = vmax.f32 %v728, %v730
        %802 = vmax.xlane.f32.xlu0 %v801
        %v803 = vpop.xlane.xlu0 %802
        %v804 = vmax.f32 %v734, %v736
        %805 = vmax.xlane.f32.xlu0 %v804
        %v806 = vpop.xlane.xlu0 %805
        %v807 = vmax.f32 %v738, %v740
        %808 = vmax.xlane.f32.xlu0 %v807
        %v809 = vpop.xlane.xlu0 %808
        %v810 = vmax.f32 %v744, %v746
        %811 = vmax.xlane.f32.xlu0 %v810
        %v812 = vpop.xlane.xlu0 %811
        %v813 = vmax.f32 %v748, %v750
        %814 = vmax.xlane.f32.xlu0 %v813
        %v815 = vpop.xlane.xlu0 %814
        %v816 = vmax.f32 %v754, %v756
        %817 = vmax.xlane.f32.xlu0 %v816
        %v818 = vpop.xlane.xlu0 %817
        %v819 = vmax.f32 %v758, %v760
        %820 = vmax.xlane.f32.xlu0 %v819
        %v821 = vpop.xlane.xlu0 %820
        %v822 = vmax.f32 %v764, %v766
        %823 = vmax.xlane.f32.xlu0 %v822
        %v824 = vpop.xlane.xlu0 %823
        %v825 = vmax.f32 %v768, %v770
        %826 = vmax.xlane.f32.xlu0 %v825
        %v827 = vpop.xlane.xlu0 %826
        %v828 = vmax.f32 %v774, %v776
        %829 = vmax.xlane.f32.xlu0 %v828
        %v830 = vpop.xlane.xlu0 %829
        %v831 = vmax.f32 %v778, %v780
        %832 = vmax.xlane.f32.xlu0 %v831
        %v833 = vpop.xlane.xlu0 %832
        %v834 = vmax.f32 %v784, %v786
        %835 = vmax.xlane.f32.xlu0 %v834
        %v836 = vpop.xlane.xlu0 %835
        %v837 = vmax.f32 %v788, %v790
        %838 = vmax.xlane.f32.xlu0 %v837
        %v839 = vpop.xlane.xlu0 %838
        %v840 = vsub.f32 %v714, %v794
        %v841 = vsub.f32 %v716, %v794
        %v842 = vsub.f32 %v718, %v797
        %v843 = vsub.f32 %v720, %v797
        %v844 = vsub.f32 %v724, %v800
        %v845 = vsub.f32 %v726, %v800
        %v846 = vsub.f32 %v728, %v803
        %v847 = vsub.f32 %v730, %v803
        %v848 = vsub.f32 %v734, %v806
        %v849 = vsub.f32 %v736, %v806
        %v850 = vsub.f32 %v738, %v809
        %v851 = vsub.f32 %v740, %v809
        %v852 = vsub.f32 %v744, %v812
        %v853 = vsub.f32 %v746, %v812
        %v854 = vsub.f32 %v748, %v815
        %v855 = vsub.f32 %v750, %v815
        %v856 = vsub.f32 %v754, %v818
        %v857 = vsub.f32 %v756, %v818
        %v858 = vsub.f32 %v758, %v821
        %v859 = vsub.f32 %v760, %v821
        %v860 = vsub.f32 %v764, %v824
        %v861 = vsub.f32 %v766, %v824
        %v862 = vsub.f32 %v768, %v827
        %v863 = vsub.f32 %v770, %v827
        %v864 = vsub.f32 %v774, %v830
        %v865 = vsub.f32 %v776, %v830
        %v866 = vsub.f32 %v778, %v833
        %v867 = vsub.f32 %v780, %v833
        %v868 = vsub.f32 %v784, %v836
        %v869 = vsub.f32 %v786, %v836
        %v870 = vsub.f32 %v788, %v839
        %v871 = vsub.f32 %v790, %v839
        %v872 = vmul.f32 %v840, 1.442695
        %v873 = vpow.pop %v872
        %v874 = vmul.f32 %v841, 1.442695
        %v875 = vpow.pop %v874
        %v876 = vmul.f32 %v842, 1.442695
        %v877 = vpow.pop %v876
        %v878 = vmul.f32 %v843, 1.442695
        %v879 = vpow.pop %v878
        %v880 = vmul.f32 %v844, 1.442695
        %v881 = vpow.pop %v880
        %v882 = vmul.f32 %v845, 1.442695
        %v883 = vpow.pop %v882
        %v884 = vmul.f32 %v846, 1.442695
        %v885 = vpow.pop %v884
        %v886 = vmul.f32 %v847, 1.442695
        %v887 = vpow.pop %v886
        %v888 = vmul.f32 %v848, 1.442695
        %v889 = vpow.pop %v888
        %v890 = vmul.f32 %v849, 1.442695
        %v891 = vpow.pop %v890
        %v892 = vmul.f32 %v850, 1.442695
        %v893 = vpow.pop %v892
        %v894 = vmul.f32 %v851, 1.442695
        %v895 = vpow.pop %v894
        %v896 = vmul.f32 %v852, 1.442695
        %v897 = vpow.pop %v896
        %v898 = vmul.f32 %v853, 1.442695
        %v899 = vpow.pop %v898
        %v900 = vmul.f32 %v854, 1.442695
        %v901 = vpow.pop %v900
        %v902 = vmul.f32 %v855, 1.442695
        %v903 = vpow.pop %v902
        %v904 = vmul.f32 %v856, 1.442695
        %v905 = vpow.pop %v904
        %v906 = vmul.f32 %v857, 1.442695
        %v907 = vpow.pop %v906
        %v908 = vmul.f32 %v858, 1.442695
        %v909 = vpow.pop %v908
        %v910 = vmul.f32 %v859, 1.442695
        %v911 = vpow.pop %v910
        %v912 = vmul.f32 %v860, 1.442695
        %v913 = vpow.pop %v912
        %v914 = vmul.f32 %v861, 1.442695
        %v915 = vpow.pop %v914
        %v916 = vmul.f32 %v862, 1.442695
        %v917 = vpow.pop %v916
        %v918 = vmul.f32 %v863, 1.442695
        %v919 = vpow.pop %v918
        %v920 = vmul.f32 %v864, 1.442695
        %v921 = vpow.pop %v920
        %v922 = vmul.f32 %v865, 1.442695
        %v923 = vpow.pop %v922
        %v924 = vmul.f32 %v866, 1.442695
        %v925 = vpow.pop %v924
        %v926 = vmul.f32 %v867, 1.442695
        %v927 = vpow.pop %v926
        %v928 = vmul.f32 %v868, 1.442695
        %v929 = vpow.pop %v928
        %v930 = vmul.f32 %v869, 1.442695
        %v931 = vpow.pop %v930
        %v932 = vmul.f32 %v870, 1.442695
        %v933 = vpow.pop %v932
        %v934 = vmul.f32 %v871, 1.442695
        %v935 = vpow.pop %v934
        %v936 = vadd.f32 %v873, %v875
        %937 = vadd.xlane.f32.xlu0 %v936
        %v938 = vpop.xlane.xlu0 %937
        %v939 = vadd.f32 %v877, %v879
        %940 = vadd.xlane.f32.xlu0 %v939
        %v941 = vpop.xlane.xlu0 %940
        %v942 = vadd.f32 %v881, %v883
        %943 = vadd.xlane.f32.xlu0 %v942
        %v944 = vpop.xlane.xlu0 %943
        %v945 = vadd.f32 %v885, %v887
        %946 = vadd.xlane.f32.xlu0 %v945
        %v947 = vpop.xlane.xlu0 %946
        %v948 = vadd.f32 %v889, %v891
        %949 = vadd.xlane.f32.xlu0 %v948
        %v950 = vpop.xlane.xlu0 %949
        %v951 = vadd.f32 %v893, %v895
        %952 = vadd.xlane.f32.xlu0 %v951
        %v953 = vpop.xlane.xlu0 %952
        %v954 = vadd.f32 %v897, %v899
        %955 = vadd.xlane.f32.xlu0 %v954
        %v956 = vpop.xlane.xlu0 %955
        %v957 = vadd.f32 %v901, %v903
        %958 = vadd.xlane.f32.xlu0 %v957
        %v959 = vpop.xlane.xlu0 %958
        %v960 = vadd.f32 %v905, %v907
        %961 = vadd.xlane.f32.xlu0 %v960
        %v962 = vpop.xlane.xlu0 %961
        %v963 = vadd.f32 %v909, %v911
        %964 = vadd.xlane.f32.xlu0 %v963
        %v965 = vpop.xlane.xlu0 %964
        %v966 = vadd.f32 %v913, %v915
        %967 = vadd.xlane.f32.xlu0 %v966
        %v968 = vpop.xlane.xlu0 %967
        %v969 = vadd.f32 %v917, %v919
        %970 = vadd.xlane.f32.xlu0 %v969
        %v971 = vpop.xlane.xlu0 %970
        %v972 = vadd.f32 %v921, %v923
        %973 = vadd.xlane.f32.xlu0 %v972
        %v974 = vpop.xlane.xlu0 %973
        %v975 = vadd.f32 %v925, %v927
        %976 = vadd.xlane.f32.xlu0 %v975
        %v977 = vpop.xlane.xlu0 %976
        %v978 = vadd.f32 %v929, %v931
        %979 = vadd.xlane.f32.xlu0 %v978
        %v980 = vpop.xlane.xlu0 %979
        %v981 = vadd.f32 %v933, %v935
        %982 = vadd.xlane.f32.xlu0 %v981
        %v983 = vpop.xlane.xlu0 %982
        %v984 = vrcp.pop %v938
        %v985 = vrcp.pop %v941
        %v986 = vrcp.pop %v944
        %v987 = vrcp.pop %v947
        %v988 = vrcp.pop %v950
        %v989 = vrcp.pop %v953
        %v990 = vrcp.pop %v956
        %v991 = vrcp.pop %v959
        %v992 = vrcp.pop %v962
        %v993 = vrcp.pop %v965
        %v994 = vrcp.pop %v968
        %v995 = vrcp.pop %v971
        %v996 = vrcp.pop %v974
        %v997 = vrcp.pop %v977
        %v998 = vrcp.pop %v980
        %v999 = vrcp.pop %v983
        %v1000 = vmul.f32 %v873, %v984
        %v1001 = vmul.f32 %v875, %v984
        %v1002 = vmul.f32 %v877, %v985
        %v1003 = vmul.f32 %v879, %v985
        %v1004 = vmul.f32 %v881, %v986
        %v1005 = vmul.f32 %v883, %v986
        %v1006 = vmul.f32 %v885, %v987
        %v1007 = vmul.f32 %v887, %v987
        %v1008 = vmul.f32 %v889, %v988
        %v1009 = vmul.f32 %v891, %v988
        %v1010 = vmul.f32 %v893, %v989
        %v1011 = vmul.f32 %v895, %v989
        %v1012 = vmul.f32 %v897, %v990
        %v1013 = vmul.f32 %v899, %v990
        %v1014 = vmul.f32 %v901, %v991
        %v1015 = vmul.f32 %v903, %v991
        %v1016 = vmul.f32 %v905, %v992
        %v1017 = vmul.f32 %v907, %v992
        %v1018 = vmul.f32 %v909, %v993
        %v1019 = vmul.f32 %v911, %v993
        %v1020 = vmul.f32 %v913, %v994
        %v1021 = vmul.f32 %v915, %v994
        %v1022 = vmul.f32 %v917, %v995
        %v1023 = vmul.f32 %v919, %v995
        %v1024 = vmul.f32 %v921, %v996
        %v1025 = vmul.f32 %v923, %v996
        %v1026 = vmul.f32 %v925, %v997
        %v1027 = vmul.f32 %v927, %v997
        %v1028 = vmul.f32 %v929, %v998
        %v1029 = vmul.f32 %v931, %v998
        %v1030 = vmul.f32 %v933, %v999
        %v1031 = vmul.f32 %v935, %v999
        %v1032 = vpack.c.bf16 %v614, %v610
        %v1033 = vpack.c.bf16 %v616, %v612
        %v1034 = vpack.c.bf16 %v624, %v620
        %v1035 = vpack.c.bf16 %v626, %v622
        %v1036 = vpack.c.bf16 %v1002, %v1000
        %v1037 = vpack.c.bf16 %v1003, %v1001
        %v1038 = vpack.c.bf16 %v1006, %v1004
        %v1039 = vpack.c.bf16 %v1007, %v1005
        %v1040 = vpack.c.bf16 %v1010, %v1008
        %v1041 = vpack.c.bf16 %v1011, %v1009
        %v1042 = vpack.c.bf16 %v1014, %v1012
        %v1043 = vpack.c.bf16 %v1015, %v1013
        %v1044 = vpack.c.bf16 %v1018, %v1016
        %v1045 = vpack.c.bf16 %v1019, %v1017
        %v1046 = vpack.c.bf16 %v1022, %v1020
        %v1047 = vpack.c.bf16 %v1023, %v1021
        %v1048 = vpack.c.bf16 %v1026, %v1024
        %v1049 = vpack.c.bf16 %v1027, %v1025
        %v1050 = vpack.c.bf16 %v1030, %v1028
        %v1051 = vpack.c.bf16 %v1031, %v1029
        %1052 = vmatprep.subr.bf16.mxu0 %v1051
        %1053 = vmatpush1.bf16.xpose.msra.mxu0 %v1050
        %1054 = vmatprep.subr.bf16.mxu0 %v1049
        %1055 = vmatpush1.bf16.xpose.msra.mxu0 %v1048
        %1056 = vmatprep.subr.bf16.mxu0 %v1047
        %1057 = vmatpush1.bf16.xpose.msra.mxu0 %v1046
        %1058 = vmatprep.subr.bf16.mxu0 %v1045
        %1059 = vmatpush1.bf16.xpose.msra.mxu0 %v1044
        %1060 = vmatprep.subr.bf16.mxu0 %v1043
        %1061 = vmatpush1.bf16.xpose.msra.mxu0 %v1042
        %1062 = vmatprep.subr.bf16.mxu0 %v1041
        %1063 = vmatpush1.bf16.xpose.msra.mxu0 %v1040
        %1064 = vmatprep.subr.bf16.mxu0 %v1039
        %1065 = vmatpush1.bf16.xpose.msra.mxu0 %v1038
        %1066 = vmatprep.subr.bf16.mxu0 %v1037
        %1067 = vmatpush1.bf16.xpose.msra.mxu0 %v1036
        %1068 = vmatprep.subr.bf16.mxu0 0
        %1069 = vmatpush2.bf16.xpose.msra.mxu0 0
        %1070 = vmatprep.subr.bf16.mxu0 0
        %1071 = vmatpush2.bf16.xpose.msra.mxu0 0
        %1072 = vmatprep.subr.bf16.mxu0 0
        %1073 = vmatpush2.bf16.xpose.msra.mxu0 0
        %1074 = vmatprep.subr.bf16.mxu0 0
        %1075 = vmatpush2.bf16.xpose.msra.mxu0 0
        %1076 = vmatprep.subr.bf16.mxu0 0
        %1077 = vmatpush2.bf16.xpose.msra.mxu0 0
        %1078 = vmatprep.subr.bf16.mxu0 0
        %1079 = vmatpush2.bf16.xpose.msra.mxu0 0
        %1080 = vmatprep.subr.bf16.mxu0 0
        %1081 = vmatpush2.bf16.xpose.msra.mxu0 0
        %1082 = vmatprep.subr.bf16.mxu0 0
        %1083 = vmatpush2.bf16.xpose.msra.mxu0 0
        %1084 = vmatprep.mubr.bf16.mxu0 %v1033
        %1085 = vmatmul.mubr.bf16.gmra.mxu0 %v1032
        %v1086 = vpop.f32.mrf.mxu0
        %v1087 = vadd.f32 0.0, %v1086
        %v1088 = vpop.f32.mrf.mxu0
        %v1089 = vpop.f32.mrf.mxu0
        %v1090 = vadd.f32 0.0, %v1089
        %v1091 = vpop.f32.mrf.mxu0
        %1092 = vmatprep.mubr.bf16.mxu0 %v1035
        %1093 = vmatmul.mubr.bf16.gmra.mxu0 %v1034
        %v1094 = vpop.f32.mrf.mxu0
        %v1095 = vadd.f32 0.0, %v1094
        %v1096 = vpop.f32.mrf.mxu0
        %v1097 = vpop.f32.mrf.mxu0
        %v1098 = vadd.f32 0.0, %v1097
        %v1099 = vpop.f32.mrf.mxu0
        %1100 = vdwg.mxu0
        %v1101 = vld [vmem:[#allocation2] sm:$0x1]
        %v1103 = vlaneseq
        %v1104 = vshrl.u32 %v1103, 7
        %v1105 = vsub.s32 0, %v1104
        %v1106 = vrot.slane %v1101, %v1105
        %1107 = vset.pattern.permute.xlu0 0
        %1108 = vperm.xlu0 %1107, %v1106
        %v1109 = vpop.permute.xlu0 %1108
        %v1111 = vmul.f32 %v1109, %v1087
        %v1112 = vmul.f32 %v1109, %v1090
        %v1113 = vmul.f32 %v1109, %v1095
        %v1114 = vmul.f32 %v1109, %v1098
        %v1115 = vadd.f32 %v1111, %v411
        %v1116 = vadd.f32 %v1112, %v412
        %v1117 = vadd.f32 %v1113, %v413
        %v1118 = vadd.f32 %v1114, %v414
        %1119 = vst [vmem:[%s409] sm:$0xff] %v1115
        %1120 = vst [vmem:[%s409 + $0x8] sm:$0xff] %v1116
        %1121 = vst [vmem:[%s409 + $0x10] sm:$0xff] %v1117
        %1122 = vst [vmem:[%s409 + $0x18] sm:$0xff] %v1118
        %s1123 = sand.u32 %s254, 1
        %s1124 = scalar_lea.sflag [#allocation5], %s1123
        %s1125 = sand.u32 %s254, 1
        %s1126 = smul.addr %s1125, 32
        %s1127 = scalar_lea.vmem [#allocation8], %s1126
        // Predicated region
        $region65: #{tpu_custom_call.1} parent=55 // pred_check
          %p1128 = pneg %p264
        $region66: #{tpu_custom_call.1} parent=55 // pred_check_branch
          %1130 = sbr.rel (%p1128) target = $region68
        $region67: #{tpu_custom_call.1} parent=55 // pred_region
          %s1132 = ssub.s32 512, 512
          %1133 = vsyncadd %s1124, %s1132
          %s1134 = smul.addr %s35, 8
          %s1135 = sadd.s32 %s36, %s1134
          %s1136 = smul.addr %s1135, 128
          %s1137 = scalar_lea.hbm %s9, %s1136
          %s1138 = sshll.u32 %s1127, 4
          %s1139 = int_to_ptr.vmem [resolvable:$true] %s1138
          %1144 = dma.vmem_to_hbm [thread:$0]  %s1139, 512, %s1137, %s1124, 128, 256, 8
        $region68: #{tpu_custom_call.1} parent=55 // pred_fallthru
          _
      $region56: #{tpu_custom_call.1} parent=5 // pred_fallthru
        _
      %p1145 = scmp.le.s32.totalorder 2, %s26
      // Predicated region
      $region69: #{tpu_custom_call.1} parent=5 // pred_check
        %p1146 = pneg %p1145
      $region70: #{tpu_custom_call.1} parent=5 // pred_check_branch
        %1148 = sbr.rel (%p1146) target = $region72
      $region71: #{tpu_custom_call.1} parent=5 // pred_region
        %s1149 = ssub.s32 %s26, 2
        // Predicated region
        $region73: #{tpu_custom_call.1} parent=71 // pred_check
          %p1150 = pneg %p270
        $region74: #{tpu_custom_call.1} parent=71 // pred_check_branch
          %1152 = sbr.rel (%p1150) target = $region76
        $region75: #{tpu_custom_call.1} parent=71 // pred_region
          %s1153 = sand.u32 %s255, 1
          %s1154 = scalar_lea.sflag [#allocation5], %s1153
          %s1155 = sand.u32 %s255, 1
          %s1156 = smul.addr %s1155, 32
          %s1157 = scalar_lea.vmem [#allocation8], %s1156
          %1158 = dma.done %s1154, 512
        $region76: #{tpu_custom_call.1} parent=71 // pred_fallthru
          _
      $region72: #{tpu_custom_call.1} parent=5 // pred_fallthru
        _
    $region6: #{tpu_custom_call.1} parent=1 // loop_footer
      %s30 = sadd.s32 1, %s26
    $region7: #{tpu_custom_call.1} parent=1 // loop_footer_branch
      %25 = sbr.rel target = $region3
    $region8: #{tpu_custom_call.1} parent=1 // loop_exit
      _
    %1159 = vsyncpa [#allocation4], 1
    %s1160 = scalar_lea.sflag [#allocation4], 1
    %1161 = vsyncpa %s1160, 1
    %1162 = vsyncpa [#allocation7], 1
    %s1163 = scalar_lea.sflag [#allocation7], 1
    %1164 = vsyncpa %s1163, 1
    %1165 = vsyncpa [#allocation5], 1
    %s1166 = scalar_lea.sflag [#allocation5], 1
    %1167 = vsyncpa %s1166, 1

</llo_original>
